<compile_context>
chip_gen: v7x
topology: tpu7x:2x2x1
jax: 0.10.0
libtpu: 0.0.40
codegen_flags: <defaults>
</compile_context>

<pallas_src>
import jax
import jax.numpy as jnp
from jax import lax
from jax.experimental import pallas as pl
from jax.experimental.pallas import tpu as pltpu


def _head_kernel(x_ref, wc_ref, bias_ref, wf_ref, bf_ref, o_ref):
    # x_ref:    (NB, C, HW)   batch block, channel-major, spatial (HW) in lanes
    # wc_ref:   (Cout, C)     1x1 conv weight with BN scale folded in
    # bias_ref: (Cout, 1)     folded BN bias = beta - mean * scale
    # wf_ref:   (Cout, Kpad)  FC weight (transposed), 1/HW folded in, K padded to 128
    # bf_ref:   (1, Kpad)     FC bias (padded)
    # o_ref:    (NB, Kpad)    logits for this batch block (padded class dim)
    nb = x_ref.shape[0]
    cols = []
    for n in range(nb):  # static unroll over the batch block
        # 1x1 conv == matmul over channels; output (Cout, HW) is lane-dense (MXU).
        y = jnp.dot(wc_ref[...], x_ref[n], preferred_element_type=jnp.float32)
        # BN bias + ReLU (BN scale already folded into wc) — VPU.
        y = jnp.maximum(y + bias_ref[...], 0.0)
        # Global average pool == lane sum (1/HW folded into the FC weight) — XLU.
        cols.append(jnp.sum(y, axis=-1, keepdims=True))            # (Cout, 1)
    pooled_t = jnp.concatenate(cols, axis=-1)                       # (Cout, NB)
    # One FC matmul for the whole block: pooled (NB, Cout) @ wf (Cout, Kpad).
    logits = lax.dot_general(
        pooled_t, wf_ref[...],
        dimension_numbers=(((0,), (0,)), ((), ())),                 # contract Cout
        preferred_element_type=jnp.float32)                         # (NB, Kpad)
    o_ref[...] = logits + bf_ref[...]


def classification_head(x_nchw, conv_w, bn_gamma, bn_beta, bn_mean, bn_var,
                        fc_w, fc_b, *, eps=1e-4, block_n=None):
    """x_nchw: (N, C, H, W) f32.  conv_w: (Cout, C, 1, 1).  fc_w: (K, Cout).  fc_b: (K,).

    eps defaults to 1e-4 to match BatchNormActivation(epsilon=0.0001) in the spec.
    """
    N, C, H, W = x_nchw.shape
    Cout = conv_w.shape[0]
    K = fc_w.shape[0]
    HW = H * W
    KPAD = ((K + 127) // 128) * 128

    # Free layout change (no transpose): NCHW -> (N, C, H*W); HW stays the minor dim.
    x = x_nchw.reshape(N, C, HW)

    # Algebraic folds (exact, eval-mode BN):
    scale = bn_gamma / jnp.sqrt(bn_var + eps)                       # (Cout,)
    wc = conv_w.reshape(Cout, C) * scale[:, None]                   # (Cout, C)  conv*BN-scale
    bias = (bn_beta - bn_mean * scale).reshape(Cout, 1)             # (Cout, 1)  BN bias
    wf = jnp.zeros((Cout, KPAD), jnp.float32).at[:, :K].set(fc_w.T / HW)   # 1/HW folded
    bf = jnp.zeros((1, KPAD), jnp.float32).at[:, :K].set(fc_b)

    # Batch tiling: one grid step per block of batch elements (block of 8 keeps the
    # output sublane-aligned when N is large; otherwise collapse the grid entirely).
    if block_n is None:
        block_n = 8 if (N % 8 == 0) else N
    grid = (N // block_n,)

    out = pl.pallas_call(
        _head_kernel,
        out_shape=jax.ShapeDtypeStruct((N, KPAD), jnp.float32),
        grid=grid,
        in_specs=[
            pl.BlockSpec((block_n, C, HW), lambda i: (i, 0, 0)),
            pl.BlockSpec((Cout, C), lambda i: (0, 0)),
            pl.BlockSpec((Cout, 1), lambda i: (0, 0)),
            pl.BlockSpec((Cout, KPAD), lambda i: (0, 0)),
            pl.BlockSpec((1, KPAD), lambda i: (0, 0)),
        ],
        out_specs=pl.BlockSpec((block_n, KPAD), lambda i: (i, 0)),
        compiler_params=pltpu.CompilerParams(
            dimension_semantics=("parallel",)),
    )(x, wc, bias, wf, bf)
    return out[:, :K]


def _reference(x_nchw, conv_w, bn_gamma, bn_beta, bn_mean, bn_var, fc_w, fc_b, eps=1e-4):
    # Pure-JAX reference mirroring the PyTorch forward (eval-mode BN).
    N, C, H, W = x_nchw.shape
    Cout = conv_w.shape[0]
    y = jnp.einsum('nchw,oc->nohw', x_nchw, conv_w.reshape(Cout, C))
    y = (y - bn_mean[None, :, None, None]) / jnp.sqrt(bn_var[None, :, None, None] + eps)
    y = y * bn_gamma[None, :, None, None] + bn_beta[None, :, None, None]
    y = jnp.maximum(y, 0.0)
    pooled = jnp.mean(y, axis=(2, 3))                               # (N, Cout)
    return pooled @ fc_w.T + fc_b


if __name__ == "__main__":
    # Module config: num_classes=10, channels=4, endpoints_num_filters=32, dropout_rate=0.0
    N, C, H, W = 2, 4, 16, 16
    ENDPOINTS = 32
    NUM_CLASSES = 10

    key = jax.random.PRNGKey(0)
    ks = jax.random.split(key, 8)
    x = jax.random.normal(ks[0], (N, C, H, W), jnp.float32)
    conv_w = jax.random.normal(ks[1], (ENDPOINTS, C, 1, 1), jnp.float32) * 0.1
    bn_gamma = jax.random.normal(ks[2], (ENDPOINTS,), jnp.float32) * 0.1 + 1.0
    bn_beta = jax.random.normal(ks[3], (ENDPOINTS,), jnp.float32) * 0.1
    bn_mean = jax.random.normal(ks[4], (ENDPOINTS,), jnp.float32) * 0.1
    bn_var = jax.random.uniform(ks[5], (ENDPOINTS,), jnp.float32, 0.5, 1.5)
    fc_w = jax.random.normal(ks[6], (NUM_CLASSES, ENDPOINTS), jnp.float32) * 0.1
    fc_b = jax.random.normal(ks[7], (NUM_CLASSES,), jnp.float32) * 0.1

    out = classification_head(x, conv_w, bn_gamma, bn_beta, bn_mean, bn_var, fc_w, fc_b)
    out = jax.block_until_ready(out)

    ref = _reference(x, conv_w, bn_gamma, bn_beta, bn_mean, bn_var, fc_w, fc_b)
    assert out.shape == (N, NUM_CLASSES)
    assert jnp.allclose(out, ref, atol=1e-4, rtol=1e-4), (out, ref)
    print("KERNEL_OK")
</pallas_src>

<mosaic_0001>
module attributes {stable_mosaic.version = 11 : i64} {
  func.func @_head_kernel(%arg0: i32, %arg1: memref<2x4x256xf32, #tpu.memory_space<vmem>>, %arg2: memref<32x4xf32, #tpu.memory_space<vmem>>, %arg3: memref<32x1xf32, #tpu.memory_space<vmem>>, %arg4: memref<32x128xf32, #tpu.memory_space<vmem>>, %arg5: memref<1x128xf32, #tpu.memory_space<vmem>>, %arg6: memref<2x128xf32, #tpu.memory_space<vmem>>) attributes {dimension_semantics = [#tpu.dimension_semantics<parallel>], iteration_bounds = array<i64: 1>, scalar_prefetch = 0 : i64, scratch_operands = 0 : i64, tpu.core_type = #tpu.core_type<tc>, window_params = [{transform_indices = @transform_0, window_bounds = array<i64: 2, 4, 256>}, {pipeline_mode = #tpu.pipeline_mode<synchronous>, transform_indices = @transform_1, window_bounds = array<i64: 32, 4>}, {pipeline_mode = #tpu.pipeline_mode<synchronous>, transform_indices = @transform_2, window_bounds = array<i64: 32, 1>}, {pipeline_mode = #tpu.pipeline_mode<synchronous>, transform_indices = @transform_3, window_bounds = array<i64: 32, 128>}, {pipeline_mode = #tpu.pipeline_mode<synchronous>, transform_indices = @transform_4, window_bounds = array<i64: 1, 128>}, {transform_indices = @transform_5, window_bounds = array<i64: 2, 128>}]} {
    %c0 = arith.constant 0 : index
    %c0_0 = arith.constant 0 : index
    %0 = vector.load %arg2[%c0, %c0_0] : memref<32x4xf32, #tpu.memory_space<vmem>>, vector<32x4xf32>
    %c0_1 = arith.constant 0 : index
    %c0_2 = arith.constant 0 : index
    %c0_3 = arith.constant 0 : index
    %1 = vector.load %arg1[%c0_1, %c0_2, %c0_3] : memref<2x4x256xf32, #tpu.memory_space<vmem>>, vector<1x4x256xf32>
    %2 = vector.shape_cast %1 : vector<1x4x256xf32> to vector<4x256xf32>
    %cst = arith.constant dense<0.000000e+00> : vector<32x256xf32>
    %3 = tpu.matmul %0, %2, %cst {dimension_numbers = #tpu.dot_dimension_numbers<[1], [0], [0], [1], [0, 0, 1, 1], [], []>} : vector<32x4xf32>, vector<4x256xf32>, vector<32x256xf32> -> vector<32x256xf32>
    %c0_4 = arith.constant 0 : index
    %c0_5 = arith.constant 0 : index
    %4 = vector.load %arg3[%c0_4, %c0_5] : memref<32x1xf32, #tpu.memory_space<vmem>>, vector<32x1xf32>
    %5 = vector.broadcast %4 : vector<32x1xf32> to vector<32x256xf32>
    %6 = arith.addf %3, %5 : vector<32x256xf32>
    %cst_6 = arith.constant 0.000000e+00 : f32
    %7 = vector.broadcast %cst_6 : f32 to vector<32x256xf32>
    %8 = arith.maximumf %6, %7 : vector<32x256xf32>
    %cst_7 = arith.constant dense<0.000000e+00> : vector<32xf32>
    %9 = vector.multi_reduction <add>, %8, %cst_7 [1] : vector<32x256xf32> to vector<32xf32>
    %10 = vector.shape_cast %9 : vector<32xf32> to vector<32x1xf32>
    %c0_8 = arith.constant 0 : index
    %c0_9 = arith.constant 0 : index
    %11 = vector.load %arg2[%c0_8, %c0_9] : memref<32x4xf32, #tpu.memory_space<vmem>>, vector<32x4xf32>
    %c1 = arith.constant 1 : index
    %c0_10 = arith.constant 0 : index
    %c0_11 = arith.constant 0 : index
    %12 = vector.load %arg1[%c1, %c0_10, %c0_11] : memref<2x4x256xf32, #tpu.memory_space<vmem>>, vector<1x4x256xf32>
    %13 = vector.shape_cast %12 : vector<1x4x256xf32> to vector<4x256xf32>
    %cst_12 = arith.constant dense<0.000000e+00> : vector<32x256xf32>
    %14 = tpu.matmul %11, %13, %cst_12 {dimension_numbers = #tpu.dot_dimension_numbers<[1], [0], [0], [1], [0, 0, 1, 1], [], []>} : vector<32x4xf32>, vector<4x256xf32>, vector<32x256xf32> -> vector<32x256xf32>
    %c0_13 = arith.constant 0 : index
    %c0_14 = arith.constant 0 : index
    %15 = vector.load %arg3[%c0_13, %c0_14] : memref<32x1xf32, #tpu.memory_space<vmem>>, vector<32x1xf32>
    %16 = vector.broadcast %15 : vector<32x1xf32> to vector<32x256xf32>
    %17 = arith.addf %14, %16 : vector<32x256xf32>
    %cst_15 = arith.constant 0.000000e+00 : f32
    %18 = vector.broadcast %cst_15 : f32 to vector<32x256xf32>
    %19 = arith.maximumf %17, %18 : vector<32x256xf32>
    %cst_16 = arith.constant dense<0.000000e+00> : vector<32xf32>
    %20 = vector.multi_reduction <add>, %19, %cst_16 [1] : vector<32x256xf32> to vector<32xf32>
    %21 = vector.shape_cast %20 : vector<32xf32> to vector<32x1xf32>
    %22 = tpu.concatenate %10, %21 in 1 : vector<32x1xf32>, vector<32x1xf32> -> vector<32x2xf32>
    %c0_17 = arith.constant 0 : index
    %c0_18 = arith.constant 0 : index
    %23 = vector.load %arg4[%c0_17, %c0_18] : memref<32x128xf32, #tpu.memory_space<vmem>>, vector<32x128xf32>
    %cst_19 = arith.constant dense<0.000000e+00> : vector<2x128xf32>
    %24 = tpu.matmul %22, %23, %cst_19 {dimension_numbers = #tpu.dot_dimension_numbers<[0], [0], [1], [1], [0, 1, 1, 1], [], []>} : vector<32x2xf32>, vector<32x128xf32>, vector<2x128xf32> -> vector<2x128xf32>
    %c0_20 = arith.constant 0 : index
    %c0_21 = arith.constant 0 : index
    %25 = vector.load %arg5[%c0_20, %c0_21] : memref<1x128xf32, #tpu.memory_space<vmem>>, vector<1x128xf32>
    %26 = vector.broadcast %25 : vector<1x128xf32> to vector<2x128xf32>
    %27 = arith.addf %24, %26 : vector<2x128xf32>
    %c0_22 = arith.constant 0 : index
    %c0_23 = arith.constant 0 : index
    %28 = vector.load %arg6[%c0_22, %c0_23] : memref<2x128xf32, #tpu.memory_space<vmem>>, vector<2x128xf32>
    tpu.vector_store %arg6[%c0_22, %c0_23], %27 {strides = array<i32>} : memref<2x128xf32, #tpu.memory_space<vmem>>, vector<2x128xf32>,
    return
  }
  func.func @transform_0(%arg0: i32) -> (i32, i32, i32) {
    %c0_i32 = arith.constant 0 : i32
    %c0_i32_0 = arith.constant 0 : i32
    %c0_i32_1 = arith.constant 0 : i32
    return %arg0, %c0_i32, %c0_i32_0 : i32, i32, i32
  }
  func.func @transform_1(%arg0: i32) -> (i32, i32) {
    %c0_i32 = arith.constant 0 : i32
    %c0_i32_0 = arith.constant 0 : i32
    %c0_i32_1 = arith.constant 0 : i32
    return %c0_i32, %c0_i32_0 : i32, i32
  }
  func.func @transform_2(%arg0: i32) -> (i32, i32) {
    %c0_i32 = arith.constant 0 : i32
    %c0_i32_0 = arith.constant 0 : i32
    %c0_i32_1 = arith.constant 0 : i32
    return %c0_i32, %c0_i32_0 : i32, i32
  }
  func.func @transform_3(%arg0: i32) -> (i32, i32) {
    %c0_i32 = arith.constant 0 : i32
    %c0_i32_0 = arith.constant 0 : i32
    %c0_i32_1 = arith.constant 0 : i32
    return %c0_i32, %c0_i32_0 : i32, i32
  }
  func.func @transform_4(%arg0: i32) -> (i32, i32) {
    %c0_i32 = arith.constant 0 : i32
    %c0_i32_0 = arith.constant 0 : i32
    %c0_i32_1 = arith.constant 0 : i32
    return %c0_i32, %c0_i32_0 : i32, i32
  }
  func.func @transform_5(%arg0: i32) -> (i32, i32) {
    %c0_i32 = arith.constant 0 : i32
    %c0_i32_0 = arith.constant 0 : i32
    return %arg0, %c0_i32 : i32, i32
  }
}

</mosaic_0001>

<llo_original>
// kernel: tpu_custom_call.1
$region0: #{tpu_custom_call.1}
  #allocation0 [shape = 'u32[]', space=smem, size = 0x4, offset = 0x4, fixed_abs, tag = 'smem constant byte address 0x4 - core index']
  #allocation1 [shape = 'u32[144,128]{1,0:T(1,128)}', space=vmem, size = 0x12000, scoped, tag = 'internal scratch']
  %s0 = inlined_call_operand.vmem [shape: f32[2,4,256], index: 0, kind: input, shape index: {}]
  %s1 = inlined_call_operand.vmem [shape: f32[32,4], index: 1, kind: input, shape index: {}]
  %s2 = inlined_call_operand.vmem [shape: f32[32,1], index: 2, kind: input, shape index: {}]
  %s3 = inlined_call_operand.vmem [shape: f32[32,128], index: 3, kind: input, shape index: {}]
  %s4 = inlined_call_operand.vmem [shape: f32[1,128], index: 4, kind: input, shape index: {}]
  %s5 = inlined_call_operand.hbm [shape: f32[2,128], index: 5, kind: output, shape index: {}]
  %s6 = sld [smem:[#allocation0]]
  $region30: #{tpu_custom_call.1} parent=0
    _
  %s8 = ssub.s32 1, %s6
  %s9 = scalar_select 0, %s8, %s6
  $region1: #{tpu_custom_call.1} parent=0
    #allocation2 [shape = 'u8[1024]{0}', space=vmem, size = 0x400, scoped, tag = 'output window, operand 0, single buffered']
    #allocation3 [shape = 's32[1]{0}', space=sflag, size = 0x4, scoped, tag = 'scoped memory for tpu_custom_call.1']
    %10 = vsyncpa [#allocation3], 0
    // Predicated region
    $region2: #{tpu_custom_call.1} parent=1 // pred_check
      _
    $region3: #{tpu_custom_call.1} parent=1 // pred_check_branch
      %12 = sbr.rel (0) target = $region5
    $region4: #{tpu_custom_call.1} parent=1 // pred_region
      _
    $region5: #{tpu_custom_call.1} parent=1 // pred_fallthru
      _
    // Predicated region
    $region6: #{tpu_custom_call.1} parent=1 // pred_check
      _
    $region7: #{tpu_custom_call.1} parent=1 // pred_check_branch
      %14 = sbr.rel (0) target = $region9
    $region8: #{tpu_custom_call.1} parent=1 // pred_region
      _
    $region9: #{tpu_custom_call.1} parent=1 // pred_fallthru
      _
    // Predicated region
    $region10: #{tpu_custom_call.1} parent=1 // pred_check
      _
    $region11: #{tpu_custom_call.1} parent=1 // pred_check_branch
      %16 = sbr.rel (0) target = $region13
    $region12: #{tpu_custom_call.1} parent=1 // pred_region
      _
    $region13: #{tpu_custom_call.1} parent=1 // pred_fallthru
      _
    // Predicated region
    $region14: #{tpu_custom_call.1} parent=1 // pred_check
      _
    $region15: #{tpu_custom_call.1} parent=1 // pred_check_branch
      %18 = sbr.rel (0) target = $region17
    $region16: #{tpu_custom_call.1} parent=1 // pred_region
      _
    $region17: #{tpu_custom_call.1} parent=1 // pred_fallthru
      _
    // Predicated region
    $region18: #{tpu_custom_call.1} parent=1 // pred_check
      _
    $region19: #{tpu_custom_call.1} parent=1 // pred_check_branch
      %20 = sbr.rel (0) target = $region21
    $region20: #{tpu_custom_call.1} parent=1 // pred_region
      _
    $region21: #{tpu_custom_call.1} parent=1 // pred_fallthru
      _
    %v21 = vld [vmem:[%s1] sm:$0xff]
    %v22 = vld [vmem:[%s1 + $0x8] sm:$0xff]
    %v23 = vld [vmem:[%s1 + $0x10] sm:$0xff]
    %v24 = vld [vmem:[%s1 + $0x18] sm:$0xff]
    %v25 = vld [vmem:[%s0] sm:$0xff]
    %v26 = vld [vmem:[%s2] sm:$0xff]
    %v27 = vld [vmem:[%s2 + $0x8] sm:$0xff]
    %v28 = vld [vmem:[%s2 + $0x10] sm:$0xff]
    %v29 = vld [vmem:[%s2 + $0x18] sm:$0xff]
    %31 = vset.pattern.permute.xlu0 0
    %32 = vperm.xlu0 %31, %v26
    %v33 = vpop.permute.xlu0 %32
    %36 = vset.pattern.permute.xlu0 0
    %37 = vperm.xlu0 %36, %v27
    %v38 = vpop.permute.xlu0 %37
    %41 = vset.pattern.permute.xlu0 0
    %42 = vperm.xlu0 %41, %v28
    %v43 = vpop.permute.xlu0 %42
    %46 = vset.pattern.permute.xlu0 0
    %47 = vperm.xlu0 %46, %v29
    %v48 = vpop.permute.xlu0 %47
    %v51 = vcombine.high %v25, %v25
    %vm52 = vcmask 31744
    %v54 = vsel %vm52, %v21, 0
    %v57 = vsel %vm52, %v22, 0
    %v60 = vsel %vm52, %v23, 0
    %v63 = vsel %vm52, %v24, 0
    %vm65 = vcmask 1043456
    %v66 = vsel %vm65, %v25, 0
    %v68 = vsel %vm65, %v51, 0
    %70 = vmatprep.subr.mxu0 %v68
    %71 = vmatpush1.msra.mxu0 %v66
    %72 = vmatprep.subr.mxu0 0.0
    %73 = vmatpush1.msra.mxu0 0.0
    %74 = vmatprep.subr.mxu0 0.0
    %75 = vmatpush1.msra.mxu0 0.0
    %76 = vmatprep.subr.mxu0 0.0
    %77 = vmatpush1.msra.mxu0 0.0
    %78 = vmatprep.subr.mxu0 0.0
    %79 = vmatpush1.msra.mxu0 0.0
    %80 = vmatprep.subr.mxu0 0.0
    %81 = vmatpush1.msra.mxu0 0.0
    %82 = vmatprep.subr.mxu0 0.0
    %83 = vmatpush1.msra.mxu0 0.0
    %84 = vmatprep.subr.mxu0 0.0
    %85 = vmatpush1.msra.mxu0 0.0
    %86 = vmatprep.subr.mxu0 0.0
    %87 = vmatpush1.msra.mxu0 0.0
    %88 = vmatprep.subr.mxu0 0.0
    %89 = vmatpush1.msra.mxu0 0.0
    %90 = vmatprep.subr.mxu0 0.0
    %91 = vmatpush1.msra.mxu0 0.0
    %92 = vmatprep.subr.mxu0 0.0
    %93 = vmatpush1.msra.mxu0 0.0
    %94 = vmatprep.subr.mxu0 0.0
    %95 = vmatpush1.msra.mxu0 0.0
    %96 = vmatprep.subr.mxu0 0.0
    %97 = vmatpush1.msra.mxu0 0.0
    %98 = vmatprep.subr.mxu0 0.0
    %99 = vmatpush1.msra.mxu0 0.0
    %100 = vmatprep.subr.mxu0 0.0
    %101 = vmatpush1.msra.mxu0 0.0
    %102 = vmatprep.subr.mxu0 0.0
    %103 = vmatpush1.msra.mxu0 0.0
    %104 = vmatprep.subr.mxu0 0.0
    %105 = vmatpush1.msra.mxu0 0.0
    %106 = vmatprep.subr.mxu0 0.0
    %107 = vmatpush1.msra.mxu0 0.0
    %108 = vmatprep.subr.mxu0 0.0
    %109 = vmatpush1.msra.mxu0 0.0
    %110 = vmatprep.subr.mxu0 0.0
    %111 = vmatpush1.msra.mxu0 0.0
    %112 = vmatprep.subr.mxu0 0.0
    %113 = vmatpush1.msra.mxu0 0.0
    %114 = vmatprep.subr.mxu0 0.0
    %115 = vmatpush1.msra.mxu0 0.0
    %116 = vmatprep.subr.mxu0 0.0
    %117 = vmatpush1.msra.mxu0 0.0
    %118 = vmatprep.subr.mxu0 0.0
    %119 = vmatpush1.msra.mxu0 0.0
    %120 = vmatprep.subr.mxu0 0.0
    %121 = vmatpush1.msra.mxu0 0.0
    %122 = vmatprep.subr.mxu0 0.0
    %123 = vmatpush1.msra.mxu0 0.0
    %124 = vmatprep.subr.mxu0 0.0
    %125 = vmatpush1.msra.mxu0 0.0
    %126 = vmatprep.subr.mxu0 0.0
    %127 = vmatpush1.msra.mxu0 0.0
    %128 = vmatprep.subr.mxu0 0.0
    %129 = vmatpush1.msra.mxu0 0.0
    %130 = vmatprep.subr.mxu0 0.0
    %131 = vmatpush1.msra.mxu0 0.0
    %132 = vmatprep.subr.mxu0 0.0
    %133 = vmatpush1.msra.mxu0 0.0
    %134 = vmatprep.mubr.f32.mxu0 0.0
    %135 = vmatmul.mubr.f32.gmra.mrb[0].mxu0 %v54
    %v136 = vpop.f32.mrb[0].mxu0
    %v137 = vadd.f32 %v33, %v136
    %v138 = vpop.f32.mrb[0].mxu0
    %v139 = vadd.f32 %v33, %v138
    %140 = vmatprep.mubr.f32.mxu0 0.0
    %141 = vmatmul.mubr.f32.gmra.mrb[0].mxu0 %v57
    %v142 = vpop.f32.mrb[0].mxu0
    %v143 = vadd.f32 %v38, %v142
    %v144 = vpop.f32.mrb[0].mxu0
    %v145 = vadd.f32 %v38, %v144
    %146 = vmatprep.mubr.f32.mxu0 0.0
    %147 = vmatmul.mubr.f32.gmra.mrb[0].mxu0 %v60
    %v148 = vpop.f32.mrb[0].mxu0
    %v149 = vadd.f32 %v43, %v148
    %v150 = vpop.f32.mrb[0].mxu0
    %v151 = vadd.f32 %v43, %v150
    %152 = vmatprep.mubr.f32.mxu0 0.0
    %153 = vmatmul.mubr.f32.gmra.mrb[0].mxu0 %v63
    %v154 = vpop.f32.mrb[0].mxu0
    %v155 = vadd.f32 %v48, %v154
    %v156 = vpop.f32.mrb[0].mxu0
    %v157 = vadd.f32 %v48, %v156
    %158 = vdwg.mxu0
    %v159 = vmax.f32 %v137, 0.0
    %v160 = vmax.f32 %v139, 0.0
    %v161 = vmax.f32 %v143, 0.0
    %v162 = vmax.f32 %v145, 0.0
    %v163 = vmax.f32 %v149, 0.0
    %v164 = vmax.f32 %v151, 0.0
    %v165 = vmax.f32 %v155, 0.0
    %v166 = vmax.f32 %v157, 0.0
    %v167 = vadd.f32 %v159, %v160
    %168 = vadd.xlane.f32.xlu0 %v167
    %v169 = vpop.xlane.xlu0 %168
    %v170 = vadd.f32 %v161, %v162
    %171 = vadd.xlane.f32.xlu0 %v170
    %v172 = vpop.xlane.xlu0 %171
    %v173 = vadd.f32 %v163, %v164
    %174 = vadd.xlane.f32.xlu0 %v173
    %v175 = vpop.xlane.xlu0 %174
    %v176 = vadd.f32 %v165, %v166
    %177 = vadd.xlane.f32.xlu0 %v176
    %v178 = vpop.xlane.xlu0 %177
    %s179 = scalar_lea.vmem %s0, 8
    %v180 = vld [vmem:[%s179] sm:$0xff]
    %v182 = vcombine.high %v180, %v180
    %v183 = vsel %vm65, %v180, 0
    %v185 = vsel %vm65, %v182, 0
    %187 = vmatprep.subr.mxu0 %v185
    %188 = vmatpush1.msra.mxu0 %v183
    %189 = vmatprep.subr.mxu0 0.0
    %190 = vmatpush1.msra.mxu0 0.0
    %191 = vmatprep.subr.mxu0 0.0
    %192 = vmatpush1.msra.mxu0 0.0
    %193 = vmatprep.subr.mxu0 0.0
    %194 = vmatpush1.msra.mxu0 0.0
    %195 = vmatprep.subr.mxu0 0.0
    %196 = vmatpush1.msra.mxu0 0.0
    %197 = vmatprep.subr.mxu0 0.0
    %198 = vmatpush1.msra.mxu0 0.0
    %199 = vmatprep.subr.mxu0 0.0
    %200 = vmatpush1.msra.mxu0 0.0
    %201 = vmatprep.subr.mxu0 0.0
    %202 = vmatpush1.msra.mxu0 0.0
    %203 = vmatprep.subr.mxu0 0.0
    %204 = vmatpush1.msra.mxu0 0.0
    %205 = vmatprep.subr.mxu0 0.0
    %206 = vmatpush1.msra.mxu0 0.0
    %207 = vmatprep.subr.mxu0 0.0
    %208 = vmatpush1.msra.mxu0 0.0
    %209 = vmatprep.subr.mxu0 0.0
    %210 = vmatpush1.msra.mxu0 0.0
    %211 = vmatprep.subr.mxu0 0.0
    %212 = vmatpush1.msra.mxu0 0.0
    %213 = vmatprep.subr.mxu0 0.0
    %214 = vmatpush1.msra.mxu0 0.0
    %215 = vmatprep.subr.mxu0 0.0
    %216 = vmatpush1.msra.mxu0 0.0
    %217 = vmatprep.subr.mxu0 0.0
    %218 = vmatpush1.msra.mxu0 0.0
    %219 = vmatprep.subr.mxu0 0.0
    %220 = vmatpush1.msra.mxu0 0.0
    %221 = vmatprep.subr.mxu0 0.0
    %222 = vmatpush1.msra.mxu0 0.0
    %223 = vmatprep.subr.mxu0 0.0
    %224 = vmatpush1.msra.mxu0 0.0
    %225 = vmatprep.subr.mxu0 0.0
    %226 = vmatpush1.msra.mxu0 0.0
    %227 = vmatprep.subr.mxu0 0.0
    %228 = vmatpush1.msra.mxu0 0.0
    %229 = vmatprep.subr.mxu0 0.0
    %230 = vmatpush1.msra.mxu0 0.0
    %231 = vmatprep.subr.mxu0 0.0
    %232 = vmatpush1.msra.mxu0 0.0
    %233 = vmatprep.subr.mxu0 0.0
    %234 = vmatpush1.msra.mxu0 0.0
    %235 = vmatprep.subr.mxu0 0.0
    %236 = vmatpush1.msra.mxu0 0.0
    %237 = vmatprep.subr.mxu0 0.0
    %238 = vmatpush1.msra.mxu0 0.0
    %239 = vmatprep.subr.mxu0 0.0
    %240 = vmatpush1.msra.mxu0 0.0
    %241 = vmatprep.subr.mxu0 0.0
    %242 = vmatpush1.msra.mxu0 0.0
    %243 = vmatprep.subr.mxu0 0.0
    %244 = vmatpush1.msra.mxu0 0.0
    %245 = vmatprep.subr.mxu0 0.0
    %246 = vmatpush1.msra.mxu0 0.0
    %247 = vmatprep.subr.mxu0 0.0
    %248 = vmatpush1.msra.mxu0 0.0
    %249 = vmatprep.subr.mxu0 0.0
    %250 = vmatpush1.msra.mxu0 0.0
    %251 = vmatprep.mubr.f32.mxu0 0.0
    %252 = vmatmul.mubr.f32.gmra.mrb[0].mxu0 %v54
    %v253 = vpop.f32.mrb[0].mxu0
    %v254 = vadd.f32 %v33, %v253
    %v255 = vpop.f32.mrb[0].mxu0
    %v256 = vadd.f32 %v33, %v255
    %257 = vmatprep.mubr.f32.mxu0 0.0
    %258 = vmatmul.mubr.f32.gmra.mrb[0].mxu0 %v57
    %v259 = vpop.f32.mrb[0].mxu0
    %v260 = vadd.f32 %v38, %v259
    %v261 = vpop.f32.mrb[0].mxu0
    %v262 = vadd.f32 %v38, %v261
    %263 = vmatprep.mubr.f32.mxu0 0.0
    %264 = vmatmul.mubr.f32.gmra.mrb[0].mxu0 %v60
    %v265 = vpop.f32.mrb[0].mxu0
    %v266 = vadd.f32 %v43, %v265
    %v267 = vpop.f32.mrb[0].mxu0
    %v268 = vadd.f32 %v43, %v267
    %269 = vmatprep.mubr.f32.mxu0 0.0
    %270 = vmatmul.mubr.f32.gmra.mrb[0].mxu0 %v63
    %v271 = vpop.f32.mrb[0].mxu0
    %v272 = vadd.f32 %v48, %v271
    %v273 = vpop.f32.mrb[0].mxu0
    %v274 = vadd.f32 %v48, %v273
    %275 = vdwg.mxu0
    %v276 = vmax.f32 %v254, 0.0
    %v277 = vmax.f32 %v256, 0.0
    %v278 = vmax.f32 %v260, 0.0
    %v279 = vmax.f32 %v262, 0.0
    %v280 = vmax.f32 %v266, 0.0
    %v281 = vmax.f32 %v268, 0.0
    %v282 = vmax.f32 %v272, 0.0
    %v283 = vmax.f32 %v274, 0.0
    %v284 = vadd.f32 %v276, %v277
    %285 = vadd.xlane.f32.xlu0 %v284
    %v286 = vpop.xlane.xlu0 %285
    %v287 = vadd.f32 %v278, %v279
    %288 = vadd.xlane.f32.xlu0 %v287
    %v289 = vpop.xlane.xlu0 %288
    %v290 = vadd.f32 %v280, %v281
    %291 = vadd.xlane.f32.xlu0 %v290
    %v292 = vpop.xlane.xlu0 %291
    %v293 = vadd.f32 %v282, %v283
    %294 = vadd.xlane.f32.xlu0 %v293
    %v295 = vpop.xlane.xlu0 %294
    %vm296 = vcmask 7168
    %v297 = vsel %vm296, %v169, %v286
    %v298 = vsel %vm296, %v172, %v289
    %v299 = vsel %vm296, %v175, %v292
    %v300 = vsel %vm296, %v178, %v295
    %v301 = vld [vmem:[%s3] sm:$0xff]
    %v302 = vld [vmem:[%s3 + $0x8] sm:$0xff]
    %v303 = vld [vmem:[%s3 + $0x10] sm:$0xff]
    %v304 = vld [vmem:[%s3 + $0x18] sm:$0xff]
    %v305 = vld [vmem:[%s4] sm:$0x1]
    %v307 = vlaneseq
    %v308 = vshrl.u32 %v307, 7
    %v309 = vsub.s32 0, %v308
    %v310 = vrot.slane %v305, %v309
    %312 = vxpose.xlu0.b32.start [1/16] %v297, 128
    %313 = vxpose.xlu0.b32.cont [2/16] %v298, 128
    %314 = vxpose.xlu0.b32.cont [3/16] %v299, 128
    %315 = vxpose.xlu0.b32.cont [4/16] %v300, 128
    %316 = vxpose.xlu0.b32.cont [5/16] 0.0, 128
    %317 = vxpose.xlu0.b32.cont [6/16] 0.0, 128
    %318 = vxpose.xlu0.b32.cont [7/16] 0.0, 128
    %319 = vxpose.xlu0.b32.cont [8/16] 0.0, 128
    %320 = vxpose.xlu0.b32.cont [9/16] 0.0, 128
    %321 = vxpose.xlu0.b32.cont [10/16] 0.0, 128
    %322 = vxpose.xlu0.b32.cont [11/16] 0.0, 128
    %323 = vxpose.xlu0.b32.cont [12/16] 0.0, 128
    %324 = vxpose.xlu0.b32.cont [13/16] 0.0, 128
    %325 = vxpose.xlu0.b32.cont [14/16] 0.0, 128
    %326 = vxpose.xlu0.b32.cont [15/16] 0.0, 128
    %327 = vxpose.xlu0.b32.end [16/16] 0.0, 128
    %v328 = vpop.trf.xlu0
    %v329 = vpop.trf.xlu0
    %v330 = vpop.trf.xlu0
    %v331 = vpop.trf.xlu0
    %v332 = vpop.trf.xlu0
    %v333 = vpop.trf.xlu0
    %v334 = vpop.trf.xlu0
    %v335 = vpop.trf.xlu0
    %v336 = vpop.trf.xlu0
    %v337 = vpop.trf.xlu0
    %v338 = vpop.trf.xlu0
    %v339 = vpop.trf.xlu0
    %v340 = vpop.trf.xlu0
    %v341 = vpop.trf.xlu0
    %v342 = vpop.trf.xlu0
    %v343 = vpop.trf.xlu0
    %vm344 = vcmask 261120
    %v346 = vsel %vm344, %v328, 0
    %348 = vmatprep.subr.mxu0 0.0
    %349 = vmatpush1.msra.mxu0 %v301
    %350 = vmatprep.subr.mxu0 0.0
    %351 = vmatpush1.msra.mxu0 %v302
    %352 = vmatprep.subr.mxu0 0.0
    %353 = vmatpush1.msra.mxu0 %v303
    %354 = vmatprep.subr.mxu0 0.0
    %355 = vmatpush1.msra.mxu0 %v304
    %356 = vmatprep.subr.mxu0 0.0
    %357 = vmatpush1.msra.mxu0 0.0
    %358 = vmatprep.subr.mxu0 0.0
    %359 = vmatpush1.msra.mxu0 0.0
    %360 = vmatprep.subr.mxu0 0.0
    %361 = vmatpush1.msra.mxu0 0.0
    %362 = vmatprep.subr.mxu0 0.0
    %363 = vmatpush1.msra.mxu0 0.0
    %364 = vmatprep.subr.mxu0 0.0
    %365 = vmatpush1.msra.mxu0 0.0
    %366 = vmatprep.subr.mxu0 0.0
    %367 = vmatpush1.msra.mxu0 0.0
    %368 = vmatprep.subr.mxu0 0.0
    %369 = vmatpush1.msra.mxu0 0.0
    %370 = vmatprep.subr.mxu0 0.0
    %371 = vmatpush1.msra.mxu0 0.0
    %372 = vmatprep.subr.mxu0 0.0
    %373 = vmatpush1.msra.mxu0 0.0
    %374 = vmatprep.subr.mxu0 0.0
    %375 = vmatpush1.msra.mxu0 0.0
    %376 = vmatprep.subr.mxu0 0.0
    %377 = vmatpush1.msra.mxu0 0.0
    %378 = vmatprep.subr.mxu0 0.0
    %379 = vmatpush1.msra.mxu0 0.0
    %380 = vmatprep.subr.mxu0 0.0
    %381 = vmatpush1.msra.mxu0 0.0
    %382 = vmatprep.subr.mxu0 0.0
    %383 = vmatpush1.msra.mxu0 0.0
    %384 = vmatprep.subr.mxu0 0.0
    %385 = vmatpush1.msra.mxu0 0.0
    %386 = vmatprep.subr.mxu0 0.0
    %387 = vmatpush1.msra.mxu0 0.0
    %388 = vmatprep.subr.mxu0 0.0
    %389 = vmatpush1.msra.mxu0 0.0
    %390 = vmatprep.subr.mxu0 0.0
    %391 = vmatpush1.msra.mxu0 0.0
    %392 = vmatprep.subr.mxu0 0.0
    %393 = vmatpush1.msra.mxu0 0.0
    %394 = vmatprep.subr.mxu0 0.0
    %395 = vmatpush1.msra.mxu0 0.0
    %396 = vmatprep.subr.mxu0 0.0
    %397 = vmatpush1.msra.mxu0 0.0
    %398 = vmatprep.subr.mxu0 0.0
    %399 = vmatpush1.msra.mxu0 0.0
    %400 = vmatprep.subr.mxu0 0.0
    %401 = vmatpush1.msra.mxu0 0.0
    %402 = vmatprep.subr.mxu0 0.0
    %403 = vmatpush1.msra.mxu0 0.0
    %404 = vmatprep.subr.mxu0 0.0
    %405 = vmatpush1.msra.mxu0 0.0
    %406 = vmatprep.subr.mxu0 0.0
    %407 = vmatpush1.msra.mxu0 0.0
    %408 = vmatprep.subr.mxu0 0.0
    %409 = vmatpush1.msra.mxu0 0.0
    %410 = vmatprep.subr.mxu0 0.0
    %411 = vmatpush1.msra.mxu0 0.0
    %412 = vmatprep.mubr.f32.mxu0 0.0
    %413 = vmatmul.mubr.f32.gmra.mrb[0].mxu0 %v346
    %v414 = vpop.f32.mrb[0].mxu0
    %v415 = vadd.f32 %v310, %v414
    %v416 = vpop.f32.mrb[0].mxu0
    %417 = vdwg.mxu0
    %418 = vst [vmem:[#allocation2] sm:$0x3] %v415
    // Predicated region
    $region22: #{tpu_custom_call.1} parent=1 // pred_check
      _
    $region23: #{tpu_custom_call.1} parent=1 // pred_check_branch
      %420 = sbr.rel (0) target = $region25
    $region24: #{tpu_custom_call.1} parent=1 // pred_region
      %s422 = ssub.s32 32, 32
      %423 = vsyncadd [#allocation3], %s422
      %s425 = sshll.u32 [#allocation2], 4
      %s426 = int_to_ptr.vmem [resolvable:$true] %s425
      %428 = dma.vmem_to_hbm [thread:$0]  %s426, 32, %s5, [#allocation3]
    $region25: #{tpu_custom_call.1} parent=1 // pred_fallthru
      _
    // Predicated region
    $region26: #{tpu_custom_call.1} parent=1 // pred_check
      _
    $region27: #{tpu_custom_call.1} parent=1 // pred_check_branch
      %430 = sbr.rel (0) target = $region29
    $region28: #{tpu_custom_call.1} parent=1 // pred_region
      %431 = dma.done [#allocation3], 32
    $region29: #{tpu_custom_call.1} parent=1 // pred_fallthru
      _
    %432 = vsyncpa [#allocation3], 1

</llo_original>
